<compile_context>
chip_gen: v7x
topology: tpu7x:2x2x1
jax: 0.10.0
libtpu: 0.0.40
codegen_flags: <defaults>
</compile_context>

<pallas_src>
import jax
import jax.numpy as jnp
from jax.experimental import pallas as pl
from jax.experimental.pallas import tpu as pltpu

INPUT_FEATURES = 384  # hard-coded in the PyTorch module (it ignores input_dim)


def _round_up(x, m):
    return (x + m - 1) // m * m


def _rnd_fused_kernel(x_ref, w1_ref, b1_ref, w2_ref, b2_ref, out_ref):
    # x tile: [TB, 384] f32 in VMEM.  Cast to the matmul dtype (bf16 by default)
    # in-kernel so x crosses HBM once as f32 and the cast rides the VPU.
    x = x_ref[...].astype(w1_ref.dtype)

    # Layer 1, both networks fused along N: [TB,384] @ [384,HP2] -> f32 acc.
    h = jnp.dot(x, w1_ref[...], preferred_element_type=jnp.float32) + b1_ref[...]
    h = jnp.maximum(h, 0.0)  # ReLU in f32 on the VPU (v5e has no bf16 VPU path)

    # Layer 2, block-diagonal fused: [TB,HP2] @ [HP2,HP2] -> f32 acc.
    # Off-diagonal blocks of w2 are exactly zero, so there is no cross-talk
    # between predictor and target networks.
    y = jnp.dot(h.astype(w2_ref.dtype), w2_ref[...],
                preferred_element_type=jnp.float32) + b2_ref[...]

    out_ref[...] = y.astype(out_ref.dtype)


def pack_params(params, matmul_dtype=jnp.bfloat16):
    """One-time packing: fuse predictor/target weights and pad to lane multiples.

    Layout of the fused output slab columns: [0:H] = predictor, [H:2H] = target,
    [2H:HP2] = zero padding (HP2 = round_up(2H, 128))."""
    H = params["w2p"].shape[1]
    HP2 = _round_up(2 * H, 128)

    w1 = jnp.zeros((INPUT_FEATURES, HP2), matmul_dtype)
    w1 = w1.at[:, :H].set(params["w1p"].astype(matmul_dtype))
    w1 = w1.at[:, H:2 * H].set(params["w1t"].astype(matmul_dtype))

    b1 = jnp.zeros((1, HP2), jnp.float32)
    b1 = b1.at[:, :H].set(params["b1p"])
    b1 = b1.at[:, H:2 * H].set(params["b1t"])

    w2 = jnp.zeros((HP2, HP2), matmul_dtype)
    w2 = w2.at[:H, :H].set(params["w2p"].astype(matmul_dtype))
    w2 = w2.at[H:2 * H, H:2 * H].set(params["w2t"].astype(matmul_dtype))

    b2 = jnp.zeros((1, HP2), jnp.float32)
    b2 = b2.at[:, :H].set(params["b2p"])
    b2 = b2.at[:, H:2 * H].set(params["b2t"])

    return dict(w1=w1, b1=b1, w2=w2, b2=b2, hidden=H, hp2=HP2)


def rnd_forward(x, packed, *, batch_tile=512):
    """x: [B, 384] f32.  Returns (predictor_out, target_out), each [B, H] f32."""
    B, F = x.shape
    assert F == INPUT_FEATURES
    H, HP2 = packed["hidden"], packed["hp2"]

    # Batch tile: multiple of 8 (sublane), capped at batch_tile rows.
    TB = _round_up(min(batch_tile, _round_up(B, 8)), 8)
    B_pad = _round_up(B, TB)
    if B_pad != B:
        x = jnp.pad(x, ((0, B_pad - B), (0, 0)))
    n_tiles = B_pad // TB

    # Explicit VMEM budget: double-buffered x/out tiles + resident (possibly
    # double-buffered) packed weights, with headroom.
    wbytes = jnp.dtype(packed["w1"].dtype).itemsize
    needed = (2 * (TB * F * 4 + TB * HP2 * 4)
              + 2 * ((F + HP2) * HP2 * wbytes + 2 * HP2 * 4))
    vmem_limit = int(min(max(2 * needed, 32 * 1024 * 1024), 100 * 1024 * 1024))

    out = pl.pallas_call(
        _rnd_fused_kernel,
        out_shape=jax.ShapeDtypeStruct((B_pad, HP2), jnp.float32),
        grid=(n_tiles,),
        in_specs=[
            pl.BlockSpec((TB, INPUT_FEATURES), lambda i: (i, 0)),   # x tile
            pl.BlockSpec((INPUT_FEATURES, HP2), lambda i: (0, 0)),  # w1 (resident)
            pl.BlockSpec((1, HP2), lambda i: (0, 0)),               # b1 (resident)
            pl.BlockSpec((HP2, HP2), lambda i: (0, 0)),             # w2 (resident)
            pl.BlockSpec((1, HP2), lambda i: (0, 0)),               # b2 (resident)
        ],
        out_specs=pl.BlockSpec((TB, HP2), lambda i: (i, 0)),        # lane-dense slab
        compiler_params=pltpu.CompilerParams(
            dimension_semantics=("parallel",),
            vmem_limit_bytes=vmem_limit),
    )(x, packed["w1"], packed["b1"], packed["w2"], packed["b2"])

    pred = out[:B, :H]
    targ = out[:B, H:2 * H]
    return pred, targ


def init_params(key, hidden_dim):
    """Deterministic synthetic initialization (PyTorch-Linear-like uniform bounds)."""
    ks = jax.random.split(key, 8)

    def lin(kw, kb, fan_in, fan_out):
        bound = 1.0 / jnp.sqrt(fan_in)
        w = jax.random.uniform(kw, (fan_in, fan_out), jnp.float32, -bound, bound)
        b = jax.random.uniform(kb, (1, fan_out), jnp.float32, -bound, bound)
        return w, b

    w1p, b1p = lin(ks[0], ks[1], INPUT_FEATURES, hidden_dim)
    w2p, b2p = lin(ks[2], ks[3], hidden_dim, hidden_dim)
    w1t, b1t = lin(ks[4], ks[5], INPUT_FEATURES, hidden_dim)
    w2t, b2t = lin(ks[6], ks[7], hidden_dim, hidden_dim)
    return dict(w1p=w1p, b1p=b1p, w2p=w2p, b2p=b2p,
                w1t=w1t, b1t=b1t, w2t=w2t, b2t=b2t)


if __name__ == "__main__":
    key = jax.random.PRNGKey(0)
    k_x, k_p = jax.random.split(key)

    batch = 8
    hidden_dim = 32

    x = jax.random.normal(k_x, (batch, INPUT_FEATURES), jnp.float32)
    params = init_params(k_p, hidden_dim)
    packed = pack_params(params, matmul_dtype=jnp.bfloat16)

    pred, targ = rnd_forward(x, packed)
    jax.block_until_ready((pred, targ))

    H = hidden_dim

    # Reference 1: same fused/bf16 math in pure JAX (tight tolerance).
    def fused_ref(x, p):
        h = jnp.maximum(
            jnp.dot(x.astype(p["w1"].dtype), p["w1"],
                    preferred_element_type=jnp.float32) + p["b1"], 0.0)
        return jnp.dot(h.astype(p["w2"].dtype), p["w2"],
                       preferred_element_type=jnp.float32) + p["b2"]

    ref = fused_ref(x, packed)
    assert jnp.allclose(pred, ref[:, :H], atol=2e-3, rtol=2e-3)
    assert jnp.allclose(targ, ref[:, H:2 * H], atol=2e-3, rtol=2e-3)

    # Reference 2: original f32 PyTorch-style math (loose tolerance; bf16 matmuls).
    def mlp(x, w1, b1, w2, b2):
        return jnp.maximum(x @ w1 + b1, 0.0) @ w2 + b2

    ref_pred = mlp(x, params["w1p"], params["b1p"], params["w2p"], params["b2p"])
    ref_targ = mlp(x, params["w1t"], params["b1t"], params["w2t"], params["b2t"])
    assert jnp.allclose(pred, ref_pred, atol=5e-2, rtol=5e-2)
    assert jnp.allclose(targ, ref_targ, atol=5e-2, rtol=5e-2)

    assert pred.shape == (batch, hidden_dim) and targ.shape == (batch, hidden_dim)
    print("KERNEL_OK")
</pallas_src>

<mosaic_0001>
module attributes {stable_mosaic.version = 11 : i64} {
  func.func @_rnd_fused_kernel(%arg0: i32, %arg1: memref<8x384xf32, #tpu.memory_space<vmem>>, %arg2: memref<384x128xbf16, #tpu.memory_space<vmem>>, %arg3: memref<1x128xf32, #tpu.memory_space<vmem>>, %arg4: memref<128x128xbf16, #tpu.memory_space<vmem>>, %arg5: memref<1x128xf32, #tpu.memory_space<vmem>>, %arg6: memref<8x128xf32, #tpu.memory_space<vmem>>) attributes {dimension_semantics = [#tpu.dimension_semantics<parallel>], iteration_bounds = array<i64: 1>, scalar_prefetch = 0 : i64, scratch_operands = 0 : i64, tpu.core_type = #tpu.core_type<tc>, window_params = [{transform_indices = @transform_0, window_bounds = array<i64: 8, 384>}, {pipeline_mode = #tpu.pipeline_mode<synchronous>, transform_indices = @transform_1, window_bounds = array<i64: 384, 128>}, {pipeline_mode = #tpu.pipeline_mode<synchronous>, transform_indices = @transform_2, window_bounds = array<i64: 1, 128>}, {pipeline_mode = #tpu.pipeline_mode<synchronous>, transform_indices = @transform_3, window_bounds = array<i64: 128, 128>}, {pipeline_mode = #tpu.pipeline_mode<synchronous>, transform_indices = @transform_4, window_bounds = array<i64: 1, 128>}, {transform_indices = @transform_5, window_bounds = array<i64: 8, 128>}]} {
    %c0 = arith.constant 0 : index
    %c0_0 = arith.constant 0 : index
    %0 = vector.load %arg1[%c0, %c0_0] : memref<8x384xf32, #tpu.memory_space<vmem>>, vector<8x384xf32>
    %1 = arith.truncf %0 : vector<8x384xf32> to vector<8x384xbf16>
    %c0_1 = arith.constant 0 : index
    %c0_2 = arith.constant 0 : index
    %2 = vector.load %arg2[%c0_1, %c0_2] : memref<384x128xbf16, #tpu.memory_space<vmem>>, vector<384x128xbf16>
    %cst = arith.constant dense<0.000000e+00> : vector<8x128xf32>
    %3 = tpu.matmul %1, %2, %cst {dimension_numbers = #tpu.dot_dimension_numbers<[1], [0], [0], [1], [0, 0, 1, 1], [], []>} : vector<8x384xbf16>, vector<384x128xbf16>, vector<8x128xf32> -> vector<8x128xf32>
    %c0_3 = arith.constant 0 : index
    %c0_4 = arith.constant 0 : index
    %4 = vector.load %arg3[%c0_3, %c0_4] : memref<1x128xf32, #tpu.memory_space<vmem>>, vector<1x128xf32>
    %5 = vector.broadcast %4 : vector<1x128xf32> to vector<8x128xf32>
    %6 = arith.addf %3, %5 : vector<8x128xf32>
    %cst_5 = arith.constant 0.000000e+00 : f32
    %7 = vector.broadcast %cst_5 : f32 to vector<8x128xf32>
    %8 = arith.maximumf %6, %7 : vector<8x128xf32>
    %9 = arith.truncf %8 : vector<8x128xf32> to vector<8x128xbf16>
    %c0_6 = arith.constant 0 : index
    %c0_7 = arith.constant 0 : index
    %10 = vector.load %arg4[%c0_6, %c0_7] : memref<128x128xbf16, #tpu.memory_space<vmem>>, vector<128x128xbf16>
    %cst_8 = arith.constant dense<0.000000e+00> : vector<8x128xf32>
    %11 = tpu.matmul %9, %10, %cst_8 {dimension_numbers = #tpu.dot_dimension_numbers<[1], [0], [0], [1], [0, 0, 1, 1], [], []>} : vector<8x128xbf16>, vector<128x128xbf16>, vector<8x128xf32> -> vector<8x128xf32>
    %c0_9 = arith.constant 0 : index
    %c0_10 = arith.constant 0 : index
    %12 = vector.load %arg5[%c0_9, %c0_10] : memref<1x128xf32, #tpu.memory_space<vmem>>, vector<1x128xf32>
    %13 = vector.broadcast %12 : vector<1x128xf32> to vector<8x128xf32>
    %14 = arith.addf %11, %13 : vector<8x128xf32>
    %c0_11 = arith.constant 0 : index
    %c0_12 = arith.constant 0 : index
    %15 = vector.load %arg6[%c0_11, %c0_12] : memref<8x128xf32, #tpu.memory_space<vmem>>, vector<8x128xf32>
    tpu.vector_store %arg6[%c0_11, %c0_12], %14 {strides = array<i32>} : memref<8x128xf32, #tpu.memory_space<vmem>>, vector<8x128xf32>,
    return
  }
  func.func @transform_0(%arg0: i32) -> (i32, i32) {
    %c0_i32 = arith.constant 0 : i32
    %c0_i32_0 = arith.constant 0 : i32
    return %arg0, %c0_i32 : i32, i32
  }
  func.func @transform_1(%arg0: i32) -> (i32, i32) {
    %c0_i32 = arith.constant 0 : i32
    %c0_i32_0 = arith.constant 0 : i32
    %c0_i32_1 = arith.constant 0 : i32
    return %c0_i32, %c0_i32_0 : i32, i32
  }
  func.func @transform_2(%arg0: i32) -> (i32, i32) {
    %c0_i32 = arith.constant 0 : i32
    %c0_i32_0 = arith.constant 0 : i32
    %c0_i32_1 = arith.constant 0 : i32
    return %c0_i32, %c0_i32_0 : i32, i32
  }
  func.func @transform_3(%arg0: i32) -> (i32, i32) {
    %c0_i32 = arith.constant 0 : i32
    %c0_i32_0 = arith.constant 0 : i32
    %c0_i32_1 = arith.constant 0 : i32
    return %c0_i32, %c0_i32_0 : i32, i32
  }
  func.func @transform_4(%arg0: i32) -> (i32, i32) {
    %c0_i32 = arith.constant 0 : i32
    %c0_i32_0 = arith.constant 0 : i32
    %c0_i32_1 = arith.constant 0 : i32
    return %c0_i32, %c0_i32_0 : i32, i32
  }
  func.func @transform_5(%arg0: i32) -> (i32, i32) {
    %c0_i32 = arith.constant 0 : i32
    %c0_i32_0 = arith.constant 0 : i32
    return %arg0, %c0_i32 : i32, i32
  }
}

</mosaic_0001>

<llo_original>
// kernel: tpu_custom_call.1
$region0: #{tpu_custom_call.1}
  #allocation0 [shape = 'u32[]', space=smem, size = 0x4, offset = 0x4, fixed_abs, tag = 'smem constant byte address 0x4 - core index']
  #allocation1 [shape = 'u32[144,128]{1,0:T(1,128)}', space=vmem, size = 0x12000, scoped, tag = 'internal scratch']
  %s0 = inlined_call_operand.hbm [shape: f32[8,384], index: 0, kind: input, shape index: {}]
  %s1 = inlined_call_operand.hbm [shape: bf16[384,128], index: 1, kind: input, shape index: {}]
  %s2 = inlined_call_operand.vmem [shape: f32[1,128], index: 2, kind: input, shape index: {}]
  %s3 = inlined_call_operand.hbm [shape: bf16[128,128], index: 3, kind: input, shape index: {}]
  %s4 = inlined_call_operand.vmem [shape: f32[1,128], index: 4, kind: input, shape index: {}]
  %s5 = inlined_call_operand.hbm [shape: f32[8,128], index: 5, kind: output, shape index: {}]
  %s6 = sld [smem:[#allocation0]]
  $region42: #{tpu_custom_call.1} parent=0
    _
  %s8 = ssub.s32 1, %s6
  %s9 = scalar_select 0, %s8, %s6
  $region1: #{tpu_custom_call.1} parent=0
    #allocation2 [shape = 'u8[12288]{0}', space=vmem, size = 0x3000, scoped, tag = 'input window, operand 0, single buffered']
    #allocation3 [shape = 's32[1]{0}', space=sflag, size = 0x4, scoped, tag = 'scoped memory for tpu_custom_call.1']
    #allocation4 [shape = 's32[1]{0}', space=sflag, size = 0x4, scoped, tag = 'scoped memory for tpu_custom_call.1']
    #allocation5 [shape = 'u8[98304]{0}', space=vmem, size = 0x18000, scoped, tag = 'input window, operand 1, single buffered']
    #allocation6 [shape = 's32[1]{0}', space=sflag, size = 0x4, scoped, tag = 'scoped memory for tpu_custom_call.1']
    #allocation7 [shape = 'u8[32768]{0}', space=vmem, size = 0x8000, scoped, tag = 'input window, operand 3, single buffered']
    #allocation8 [shape = 'u8[4096]{0}', space=vmem, size = 0x1000, scoped, tag = 'output window, operand 0, single buffered']
    %10 = vsyncpa [#allocation3], 0
    %11 = vsyncpa [#allocation6], 0
    %12 = vsyncpa [#allocation4], 0
    // Predicated region
    $region2: #{tpu_custom_call.1} parent=1 // pred_check
      _
    $region3: #{tpu_custom_call.1} parent=1 // pred_check_branch
      %14 = sbr.rel (0) target = $region5
    $region4: #{tpu_custom_call.1} parent=1 // pred_region
      %s16 = ssub.s32 384, 384
      %17 = vsyncadd [#allocation3], %s16
      %s19 = sshll.u32 [#allocation2], 4
      %s20 = int_to_ptr.vmem [resolvable:$true] %s19
      %22 = dma.hbm_to_vmem [thread:$0]  %s0, 384, %s20, [#allocation3]
    $region5: #{tpu_custom_call.1} parent=1 // pred_fallthru
      _
    // Predicated region
    $region6: #{tpu_custom_call.1} parent=1 // pred_check
      _
    $region7: #{tpu_custom_call.1} parent=1 // pred_check_branch
      %24 = sbr.rel (0) target = $region9
    $region8: #{tpu_custom_call.1} parent=1 // pred_region
      %s26 = ssub.s32 3072, 3072
      %27 = vsyncadd [#allocation6], %s26
      %s28 = sshll.u32 [#allocation5], 4
      %s29 = int_to_ptr.vmem [resolvable:$true] %s28
      %34 = dma.hbm_to_vmem [thread:$0]  %s1, 3072, %s29, [#allocation6], 64, 64, 4
    $region9: #{tpu_custom_call.1} parent=1 // pred_fallthru
      _
    // Predicated region
    $region10: #{tpu_custom_call.1} parent=1 // pred_check
      _
    $region11: #{tpu_custom_call.1} parent=1 // pred_check_branch
      %36 = sbr.rel (0) target = $region13
    $region12: #{tpu_custom_call.1} parent=1 // pred_region
      _
    $region13: #{tpu_custom_call.1} parent=1 // pred_fallthru
      _
    // Predicated region
    $region14: #{tpu_custom_call.1} parent=1 // pred_check
      _
    $region15: #{tpu_custom_call.1} parent=1 // pred_check_branch
      %38 = sbr.rel (0) target = $region17
    $region16: #{tpu_custom_call.1} parent=1 // pred_region
      %s40 = ssub.s32 1024, 1024
      %41 = vsyncadd [#allocation6], %s40
      %s42 = sshll.u32 [#allocation7], 4
      %s43 = int_to_ptr.vmem [resolvable:$true] %s42
      %48 = dma.hbm_to_vmem [thread:$0]  %s3, 1024, %s43, [#allocation6], 64, 64, 4
    $region17: #{tpu_custom_call.1} parent=1 // pred_fallthru
      _
    // Predicated region
    $region18: #{tpu_custom_call.1} parent=1 // pred_check
      _
    $region19: #{tpu_custom_call.1} parent=1 // pred_check_branch
      %50 = sbr.rel (0) target = $region21
    $region20: #{tpu_custom_call.1} parent=1 // pred_region
      _
    $region21: #{tpu_custom_call.1} parent=1 // pred_fallthru
      _
    // Predicated region
    $region22: #{tpu_custom_call.1} parent=1 // pred_check
      _
    $region23: #{tpu_custom_call.1} parent=1 // pred_check_branch
      %52 = sbr.rel (0) target = $region25
    $region24: #{tpu_custom_call.1} parent=1 // pred_region
      %53 = dma.done [#allocation3], 384
    $region25: #{tpu_custom_call.1} parent=1 // pred_fallthru
      _
    // Predicated region
    $region26: #{tpu_custom_call.1} parent=1 // pred_check
      _
    $region27: #{tpu_custom_call.1} parent=1 // pred_check_branch
      %55 = sbr.rel (0) target = $region29
    $region28: #{tpu_custom_call.1} parent=1 // pred_region
      %56 = dma.done [#allocation6], 3072
    $region29: #{tpu_custom_call.1} parent=1 // pred_fallthru
      _
    // Predicated region
    $region30: #{tpu_custom_call.1} parent=1 // pred_check
      _
    $region31: #{tpu_custom_call.1} parent=1 // pred_check_branch
      %58 = sbr.rel (0) target = $region33
    $region32: #{tpu_custom_call.1} parent=1 // pred_region
      %59 = dma.done [#allocation6], 1024
    $region33: #{tpu_custom_call.1} parent=1 // pred_fallthru
      _
    %v61 = vld [vmem:[#allocation2] sm:$0xff]
    %v62 = vld [vmem:[#allocation2 + $0x8] sm:$0xff]
    %v63 = vld [vmem:[#allocation2 + $0x10] sm:$0xff]
    %v64 = vpack.c.bf16 %v61, %v61
    %v65 = vpack.c.bf16 %v62, %v62
    %v66 = vpack.c.bf16 %v63, %v63
    %v67 = vld [vmem:[#allocation5] sm:$0xf]
    %v68 = vld [vmem:[#allocation5 + $0x4] sm:$0xf]
    %v69 = vld [vmem:[#allocation5 + $0x8] sm:$0xf]
    %v70 = vld [vmem:[#allocation5 + $0xc] sm:$0xf]
    %v71 = vld [vmem:[#allocation5 + $0x10] sm:$0xf]
    %v72 = vld [vmem:[#allocation5 + $0x14] sm:$0xf]
    %v73 = vld [vmem:[#allocation5 + $0x18] sm:$0xf]
    %v74 = vld [vmem:[#allocation5 + $0x1c] sm:$0xf]
    %v75 = vld [vmem:[#allocation5 + $0x20] sm:$0xf]
    %v76 = vld [vmem:[#allocation5 + $0x24] sm:$0xf]
    %v77 = vld [vmem:[#allocation5 + $0x28] sm:$0xf]
    %v78 = vld [vmem:[#allocation5 + $0x2c] sm:$0xf]
    %v79 = vld [vmem:[#allocation5 + $0x30] sm:$0xf]
    %v80 = vld [vmem:[#allocation5 + $0x34] sm:$0xf]
    %v81 = vld [vmem:[#allocation5 + $0x38] sm:$0xf]
    %v82 = vld [vmem:[#allocation5 + $0x3c] sm:$0xf]
    %v83 = vld [vmem:[#allocation5 + $0x40] sm:$0xf]
    %v84 = vld [vmem:[#allocation5 + $0x44] sm:$0xf]
    %v85 = vld [vmem:[#allocation5 + $0x48] sm:$0xf]
    %v86 = vld [vmem:[#allocation5 + $0x4c] sm:$0xf]
    %v87 = vld [vmem:[#allocation5 + $0x50] sm:$0xf]
    %v88 = vld [vmem:[#allocation5 + $0x54] sm:$0xf]
    %v89 = vld [vmem:[#allocation5 + $0x58] sm:$0xf]
    %v90 = vld [vmem:[#allocation5 + $0x5c] sm:$0xf]
    %v91 = vld [vmem:[#allocation5 + $0x60] sm:$0xf]
    %v92 = vld [vmem:[#allocation5 + $0x64] sm:$0xf]
    %v93 = vld [vmem:[#allocation5 + $0x68] sm:$0xf]
    %v94 = vld [vmem:[#allocation5 + $0x6c] sm:$0xf]
    %v95 = vld [vmem:[#allocation5 + $0x70] sm:$0xf]
    %v96 = vld [vmem:[#allocation5 + $0x74] sm:$0xf]
    %v97 = vld [vmem:[#allocation5 + $0x78] sm:$0xf]
    %v98 = vld [vmem:[#allocation5 + $0x7c] sm:$0xf]
    %v99 = vld [vmem:[#allocation5 + $0x80] sm:$0xf]
    %v100 = vld [vmem:[#allocation5 + $0x84] sm:$0xf]
    %v101 = vld [vmem:[#allocation5 + $0x88] sm:$0xf]
    %v102 = vld [vmem:[#allocation5 + $0x8c] sm:$0xf]
    %v103 = vld [vmem:[#allocation5 + $0x90] sm:$0xf]
    %v104 = vld [vmem:[#allocation5 + $0x94] sm:$0xf]
    %v105 = vld [vmem:[#allocation5 + $0x98] sm:$0xf]
    %v106 = vld [vmem:[#allocation5 + $0x9c] sm:$0xf]
    %v107 = vld [vmem:[#allocation5 + $0xa0] sm:$0xf]
    %v108 = vld [vmem:[#allocation5 + $0xa4] sm:$0xf]
    %v109 = vld [vmem:[#allocation5 + $0xa8] sm:$0xf]
    %v110 = vld [vmem:[#allocation5 + $0xac] sm:$0xf]
    %v111 = vld [vmem:[#allocation5 + $0xb0] sm:$0xf]
    %v112 = vld [vmem:[#allocation5 + $0xb4] sm:$0xf]
    %v113 = vld [vmem:[#allocation5 + $0xb8] sm:$0xf]
    %v114 = vld [vmem:[#allocation5 + $0xbc] sm:$0xf]
    %v115 = vld [vmem:[%s2] sm:$0x1]
    %v117 = vlaneseq
    %v118 = vshrl.u32 %v117, 7
    %v119 = vsub.s32 0, %v118
    %v120 = vrot.slane %v115, %v119
    %v170 = vunpack.c.l.b16 %v67
    %v171 = vunpack.c.l.b16 %v68
    %v172 = vunpack.c.l.b16 %v69
    %v173 = vunpack.c.l.b16 %v70
    %v174 = vunpack.c.l.b16 %v71
    %v175 = vunpack.c.l.b16 %v72
    %v176 = vunpack.c.l.b16 %v73
    %v177 = vunpack.c.l.b16 %v74
    %v178 = vunpack.c.l.b16 %v75
    %v179 = vunpack.c.l.b16 %v76
    %v180 = vunpack.c.l.b16 %v77
    %v181 = vunpack.c.l.b16 %v78
    %v182 = vunpack.c.l.b16 %v79
    %v183 = vunpack.c.l.b16 %v80
    %v184 = vunpack.c.l.b16 %v81
    %v185 = vunpack.c.l.b16 %v82
    %v186 = vunpack.c.l.b16 %v83
    %v187 = vunpack.c.l.b16 %v84
    %v188 = vunpack.c.l.b16 %v85
    %v189 = vunpack.c.l.b16 %v86
    %v190 = vunpack.c.l.b16 %v87
    %v191 = vunpack.c.l.b16 %v88
    %v192 = vunpack.c.l.b16 %v89
    %v193 = vunpack.c.l.b16 %v90
    %v194 = vunpack.c.l.b16 %v91
    %v195 = vunpack.c.l.b16 %v92
    %v196 = vunpack.c.l.b16 %v93
    %v197 = vunpack.c.l.b16 %v94
    %v198 = vunpack.c.l.b16 %v95
    %v199 = vunpack.c.l.b16 %v96
    %v200 = vunpack.c.l.b16 %v97
    %v201 = vunpack.c.l.b16 %v98
    %v202 = vunpack.c.l.b16 %v99
    %v203 = vunpack.c.l.b16 %v100
    %v204 = vunpack.c.l.b16 %v101
    %v205 = vunpack.c.l.b16 %v102
    %v206 = vunpack.c.l.b16 %v103
    %v207 = vunpack.c.l.b16 %v104
    %v208 = vunpack.c.l.b16 %v105
    %v209 = vunpack.c.l.b16 %v106
    %v210 = vunpack.c.l.b16 %v107
    %v211 = vunpack.c.l.b16 %v108
    %v212 = vunpack.c.l.b16 %v109
    %v213 = vunpack.c.l.b16 %v110
    %v214 = vunpack.c.l.b16 %v111
    %v215 = vunpack.c.l.b16 %v112
    %v216 = vunpack.c.l.b16 %v113
    %v217 = vunpack.c.l.b16 %v114
    %v218 = vpack.c.b16 %v171, %v170
    %v219 = vpack.c.b16 %v173, %v172
    %v220 = vpack.c.b16 %v175, %v174
    %v221 = vpack.c.b16 %v177, %v176
    %v222 = vpack.c.b16 %v179, %v178
    %v223 = vpack.c.b16 %v181, %v180
    %v224 = vpack.c.b16 %v183, %v182
    %v225 = vpack.c.b16 %v185, %v184
    %v226 = vpack.c.b16 %v187, %v186
    %v227 = vpack.c.b16 %v189, %v188
    %v228 = vpack.c.b16 %v191, %v190
    %v229 = vpack.c.b16 %v193, %v192
    %v230 = vpack.c.b16 %v195, %v194
    %v231 = vpack.c.b16 %v197, %v196
    %v232 = vpack.c.b16 %v199, %v198
    %v233 = vpack.c.b16 %v201, %v200
    %v234 = vpack.c.b16 %v203, %v202
    %v235 = vpack.c.b16 %v205, %v204
    %v236 = vpack.c.b16 %v207, %v206
    %v237 = vpack.c.b16 %v209, %v208
    %v238 = vpack.c.b16 %v211, %v210
    %v239 = vpack.c.b16 %v213, %v212
    %v240 = vpack.c.b16 %v215, %v214
    %v241 = vpack.c.b16 %v217, %v216
    %266 = vmatprep.subr.bf16.mxu0 0
    %267 = vmatpush1.bf16.msra.mxu0 %v218
    %268 = vmatprep.subr.bf16.mxu0 0
    %269 = vmatpush1.bf16.msra.mxu0 %v219
    %270 = vmatprep.subr.bf16.mxu0 0
    %271 = vmatpush1.bf16.msra.mxu0 %v220
    %272 = vmatprep.subr.bf16.mxu0 0
    %273 = vmatpush1.bf16.msra.mxu0 %v221
    %274 = vmatprep.subr.bf16.mxu0 0
    %275 = vmatpush1.bf16.msra.mxu0 %v222
    %276 = vmatprep.subr.bf16.mxu0 0
    %277 = vmatpush1.bf16.msra.mxu0 %v223
    %278 = vmatprep.subr.bf16.mxu0 0
    %279 = vmatpush1.bf16.msra.mxu0 %v224
    %280 = vmatprep.subr.bf16.mxu0 0
    %281 = vmatpush1.bf16.msra.mxu0 %v225
    %282 = vmatprep.subr.bf16.mxu0 0
    %283 = vmatpush1.bf16.msra.mxu0 %v226
    %284 = vmatprep.subr.bf16.mxu0 0
    %285 = vmatpush1.bf16.msra.mxu0 %v227
    %286 = vmatprep.subr.bf16.mxu0 0
    %287 = vmatpush1.bf16.msra.mxu0 %v228
    %288 = vmatprep.subr.bf16.mxu0 0
    %289 = vmatpush1.bf16.msra.mxu0 %v229
    %290 = vmatprep.subr.bf16.mxu0 0
    %291 = vmatpush1.bf16.msra.mxu0 %v230
    %292 = vmatprep.subr.bf16.mxu0 0
    %293 = vmatpush1.bf16.msra.mxu0 %v231
    %294 = vmatprep.subr.bf16.mxu0 0
    %295 = vmatpush1.bf16.msra.mxu0 %v232
    %296 = vmatprep.subr.bf16.mxu0 0
    %297 = vmatpush1.bf16.msra.mxu0 %v233
    %298 = vmatprep.mubr.bf16.mxu0 %v65
    %299 = vmatmul.mubr.bf16.gmra.mrb[0].mxu0 %v64
    %v300 = vpop.f32.mrb[0].mxu0
    %v301 = vadd.f32 %v120, %v300
    %v302 = vpop.f32.mrb[0].mxu0
    %v303 = vpop.f32.mrb[0].mxu0
    %v304 = vpop.f32.mrb[0].mxu0
    %305 = vdwg.mxu0
    %306 = vmatprep.subr.bf16.mxu0 0
    %307 = vmatpush1.bf16.msra.mxu0 %v234
    %308 = vmatprep.subr.bf16.mxu0 0
    %309 = vmatpush1.bf16.msra.mxu0 %v235
    %310 = vmatprep.subr.bf16.mxu0 0
    %311 = vmatpush1.bf16.msra.mxu0 %v236
    %312 = vmatprep.subr.bf16.mxu0 0
    %313 = vmatpush1.bf16.msra.mxu0 %v237
    %314 = vmatprep.subr.bf16.mxu0 0
    %315 = vmatpush1.bf16.msra.mxu0 %v238
    %316 = vmatprep.subr.bf16.mxu0 0
    %317 = vmatpush1.bf16.msra.mxu0 %v239
    %318 = vmatprep.subr.bf16.mxu0 0
    %319 = vmatpush1.bf16.msra.mxu0 %v240
    %320 = vmatprep.subr.bf16.mxu0 0
    %321 = vmatpush1.bf16.msra.mxu0 %v241
    %322 = vmatprep.subr.bf16.mxu0 0
    %323 = vmatpush1.bf16.msra.mxu0 0
    %324 = vmatprep.subr.bf16.mxu0 0
    %325 = vmatpush1.bf16.msra.mxu0 0
    %326 = vmatprep.subr.bf16.mxu0 0
    %327 = vmatpush1.bf16.msra.mxu0 0
    %328 = vmatprep.subr.bf16.mxu0 0
    %329 = vmatpush1.bf16.msra.mxu0 0
    %330 = vmatprep.subr.bf16.mxu0 0
    %331 = vmatpush1.bf16.msra.mxu0 0
    %332 = vmatprep.subr.bf16.mxu0 0
    %333 = vmatpush1.bf16.msra.mxu0 0
    %334 = vmatprep.subr.bf16.mxu0 0
    %335 = vmatpush1.bf16.msra.mxu0 0
    %336 = vmatprep.subr.bf16.mxu0 0
    %337 = vmatpush1.bf16.msra.mxu0 0
    %338 = vmatprep.mubr.bf16.mxu0 0
    %339 = vmatmul.mubr.bf16.gmra.mrb[0].mxu0 %v66
    %v340 = vpop.f32.mrb[0].mxu0
    %v341 = vadd.f32 %v301, %v340
    %v342 = vpop.f32.mrb[0].mxu0
    %v343 = vpop.f32.mrb[0].mxu0
    %v344 = vpop.f32.mrb[0].mxu0
    %345 = vdwg.mxu0
    %v346 = vmax.f32 %v341, 0.0
    %v347 = vpack.c.bf16 %v346, %v346
    %v348 = vld [vmem:[#allocation7] sm:$0xf]
    %v349 = vld [vmem:[#allocation7 + $0x4] sm:$0xf]
    %v350 = vld [vmem:[#allocation7 + $0x8] sm:$0xf]
    %v351 = vld [vmem:[#allocation7 + $0xc] sm:$0xf]
    %v352 = vld [vmem:[#allocation7 + $0x10] sm:$0xf]
    %v353 = vld [vmem:[#allocation7 + $0x14] sm:$0xf]
    %v354 = vld [vmem:[#allocation7 + $0x18] sm:$0xf]
    %v355 = vld [vmem:[#allocation7 + $0x1c] sm:$0xf]
    %v356 = vld [vmem:[#allocation7 + $0x20] sm:$0xf]
    %v357 = vld [vmem:[#allocation7 + $0x24] sm:$0xf]
    %v358 = vld [vmem:[#allocation7 + $0x28] sm:$0xf]
    %v359 = vld [vmem:[#allocation7 + $0x2c] sm:$0xf]
    %v360 = vld [vmem:[#allocation7 + $0x30] sm:$0xf]
    %v361 = vld [vmem:[#allocation7 + $0x34] sm:$0xf]
    %v362 = vld [vmem:[#allocation7 + $0x38] sm:$0xf]
    %v363 = vld [vmem:[#allocation7 + $0x3c] sm:$0xf]
    %v364 = vld [vmem:[%s4] sm:$0x1]
    %v366 = vlaneseq
    %v367 = vshrl.u32 %v366, 7
    %v368 = vsub.s32 0, %v367
    %v369 = vrot.slane %v364, %v368
    %v387 = vunpack.c.l.b16 %v348
    %v388 = vunpack.c.l.b16 %v349
    %v389 = vunpack.c.l.b16 %v350
    %v390 = vunpack.c.l.b16 %v351
    %v391 = vunpack.c.l.b16 %v352
    %v392 = vunpack.c.l.b16 %v353
    %v393 = vunpack.c.l.b16 %v354
    %v394 = vunpack.c.l.b16 %v355
    %v395 = vunpack.c.l.b16 %v356
    %v396 = vunpack.c.l.b16 %v357
    %v397 = vunpack.c.l.b16 %v358
    %v398 = vunpack.c.l.b16 %v359
    %v399 = vunpack.c.l.b16 %v360
    %v400 = vunpack.c.l.b16 %v361
    %v401 = vunpack.c.l.b16 %v362
    %v402 = vunpack.c.l.b16 %v363
    %v403 = vpack.c.b16 %v388, %v387
    %v404 = vpack.c.b16 %v390, %v389
    %v405 = vpack.c.b16 %v392, %v391
    %v406 = vpack.c.b16 %v394, %v393
    %v407 = vpack.c.b16 %v396, %v395
    %v408 = vpack.c.b16 %v398, %v397
    %v409 = vpack.c.b16 %v400, %v399
    %v410 = vpack.c.b16 %v402, %v401
    %419 = vmatprep.subr.bf16.mxu0 0
    %420 = vmatpush1.bf16.msra.mxu0 %v403
    %421 = vmatprep.subr.bf16.mxu0 0
    %422 = vmatpush1.bf16.msra.mxu0 %v404
    %423 = vmatprep.subr.bf16.mxu0 0
    %424 = vmatpush1.bf16.msra.mxu0 %v405
    %425 = vmatprep.subr.bf16.mxu0 0
    %426 = vmatpush1.bf16.msra.mxu0 %v406
    %427 = vmatprep.subr.bf16.mxu0 0
    %428 = vmatpush1.bf16.msra.mxu0 %v407
    %429 = vmatprep.subr.bf16.mxu0 0
    %430 = vmatpush1.bf16.msra.mxu0 %v408
    %431 = vmatprep.subr.bf16.mxu0 0
    %432 = vmatpush1.bf16.msra.mxu0 %v409
    %433 = vmatprep.subr.bf16.mxu0 0
    %434 = vmatpush1.bf16.msra.mxu0 %v410
    %435 = vmatprep.subr.bf16.mxu0 0
    %436 = vmatpush1.bf16.msra.mxu0 0
    %437 = vmatprep.subr.bf16.mxu0 0
    %438 = vmatpush1.bf16.msra.mxu0 0
    %439 = vmatprep.subr.bf16.mxu0 0
    %440 = vmatpush1.bf16.msra.mxu0 0
    %441 = vmatprep.subr.bf16.mxu0 0
    %442 = vmatpush1.bf16.msra.mxu0 0
    %443 = vmatprep.subr.bf16.mxu0 0
    %444 = vmatpush1.bf16.msra.mxu0 0
    %445 = vmatprep.subr.bf16.mxu0 0
    %446 = vmatpush1.bf16.msra.mxu0 0
    %447 = vmatprep.subr.bf16.mxu0 0
    %448 = vmatpush1.bf16.msra.mxu0 0
    %449 = vmatprep.subr.bf16.mxu0 0
    %450 = vmatpush1.bf16.msra.mxu0 0
    %451 = vmatprep.mubr.bf16.mxu0 0
    %452 = vmatmul.mubr.bf16.gmra.mrb[0].mxu0 %v347
    %v453 = vpop.f32.mrb[0].mxu0
    %v454 = vadd.f32 %v369, %v453
    %v455 = vpop.f32.mrb[0].mxu0
    %v456 = vpop.f32.mrb[0].mxu0
    %v457 = vpop.f32.mrb[0].mxu0
    %458 = vdwg.mxu0
    %459 = vst [vmem:[#allocation8] sm:$0xff] %v454
    // Predicated region
    $region34: #{tpu_custom_call.1} parent=1 // pred_check
      _
    $region35: #{tpu_custom_call.1} parent=1 // pred_check_branch
      %461 = sbr.rel (0) target = $region37
    $region36: #{tpu_custom_call.1} parent=1 // pred_region
      %s463 = ssub.s32 128, 128
      %464 = vsyncadd [#allocation4], %s463
      %s466 = sshll.u32 [#allocation8], 4
      %s467 = int_to_ptr.vmem [resolvable:$true] %s466
      %469 = dma.vmem_to_hbm [thread:$0]  %s467, 128, %s5, [#allocation4]
    $region37: #{tpu_custom_call.1} parent=1 // pred_fallthru
      _
    // Predicated region
    $region38: #{tpu_custom_call.1} parent=1 // pred_check
      _
    $region39: #{tpu_custom_call.1} parent=1 // pred_check_branch
      %471 = sbr.rel (0) target = $region41
    $region40: #{tpu_custom_call.1} parent=1 // pred_region
      %472 = dma.done [#allocation4], 128
    $region41: #{tpu_custom_call.1} parent=1 // pred_fallthru
      _
    %473 = vsyncpa [#allocation3], 1
    %474 = vsyncpa [#allocation6], 1
    %475 = vsyncpa [#allocation4], 1

</llo_original>
